<compile_context>
chip_gen: v5e
topology: v5e:2x2
jax: 0.10.0
libtpu: 0.0.40
codegen_flags: <defaults>
</compile_context>

<pallas_src>
import math

import jax
import jax.numpy as jnp
from jax.experimental import pallas as pl
from jax.experimental.pallas import tpu as pltpu


def _round_up(x, m):
    return ((x + m - 1) // m) * m


def _ehcf_kernel(lhs_ref, vt_ref, out_ref):
    # (3B, D) @ (D, TI) -> (3B, TI); MXU with f32 accumulation.
    out_ref[...] = jnp.dot(lhs_ref[...], vt_ref[...],
                           preferred_element_type=jnp.float32)


def ehcf_forward(params, batch_users, whole_items, dropout_ratio, dropout_key,
                 *, item_tile=512, compute_dtype=jnp.bfloat16,
                 items_are_all=False):
    """Returns (likelihood_view, likelihood_cart, likelihood_buy, u_dropped, v),
    matching the torch.squeeze semantics of EHCF.forward."""
    D = params["embedding_user"].shape[1]

    # ---- plain-JAX glue: gathers, dropout RNG, weight composition (grid-invariant)
    u = params["embedding_user"][batch_users]                      # (B, D)
    B = u.shape[0]

    if items_are_all:
        v = params["embedding_item"]                               # (I, D), no gather copy
    else:
        v = params["embedding_item"][whole_items]                  # (I, D)
    I = v.shape[0]

    if dropout_ratio > 0.0:
        keep = jax.random.bernoulli(dropout_key, 1.0 - dropout_ratio, (B, D))
        u_d = u * keep.astype(u.dtype) / (1.0 - dropout_ratio)
    else:
        u_d = u

    # Composed behaviour-weight vectors (depend only on params -> computed once here).
    w_view = params["weight_view"]                                             # (D, 1)
    w_cart = params["weight_view_to_cart"] @ w_view + params["bias_view_to_cart"]
    w_buy = (params["weight_view_to_buy"] @ w_view + params["bias_view_to_buy"]
             + params["weight_cart_to_buy"] @ w_cart + params["bias_cart_to_buy"])
    w_rows = jnp.concatenate([w_view.T, w_cart.T, w_buy.T], axis=0)            # (3, D)

    # Stacked, dropout-applied, behaviour-scaled user LHS: (3B, D).
    lhs = (u_d[None, :, :] * w_rows[:, None, :]).reshape(3 * B, D)
    lhs = lhs.astype(compute_dtype)

    # Item table: pad item axis to a TI multiple and transpose once to (D, I_pad),
    # lane-dense on the streamed item axis (amortized over all three heads).
    TI = _round_up(min(item_tile, _round_up(I, 128)), 128)
    I_pad = _round_up(I, TI)
    v_t = jnp.pad(v, ((0, I_pad - I), (0, 0))).T.astype(compute_dtype)         # (D, I_pad)
    # TODO(synk): if production D is not a multiple of 128, pad D once at parameter
    # level so loads / MXU contraction run full-width (zeros are numerically inert).

    itemsize = jnp.dtype(compute_dtype).itemsize
    # Double-buffered footprint: streamed item tile + resident LHS + f32 output tile.
    vmem_need = (2 * D * TI * itemsize
                 + 2 * 3 * B * D * itemsize
                 + 2 * 3 * B * TI * 4)
    cp_kwargs = dict(dimension_semantics=("parallel",))
    if vmem_need > 12 * 1024 * 1024:
        # Raise the scoped-VMEM limit (v5e default 16 MiB) but stay well under
        # v7x's 64 MiB physical VMEM.
        cp_kwargs["vmem_limit_bytes"] = min(2 * vmem_need, 48 * 1024 * 1024)

    out = pl.pallas_call(
        _ehcf_kernel,
        out_shape=jax.ShapeDtypeStruct((3 * B, I_pad), jnp.float32),
        grid_spec=pltpu.PrefetchScalarGridSpec(
            num_scalar_prefetch=0,
            grid=(I_pad // TI,),
            in_specs=[
                pl.BlockSpec((3 * B, D), lambda j: (0, 0)),   # stacked user LHS (resident)
                pl.BlockSpec((D, TI), lambda j: (0, j)),      # streamed item tile
            ],
            out_specs=pl.BlockSpec((3 * B, TI), lambda j: (0, j)),
        ),
        compiler_params=pltpu.CompilerParams(**cp_kwargs),
    )(lhs, v_t)

    lv = jnp.squeeze(out[:B, :I])
    lc = jnp.squeeze(out[B:2 * B, :I])
    lb = jnp.squeeze(out[2 * B:, :I])
    return lv, lc, lb, u_d, v


def _reference_forward(params, u_dropped, v):
    # Pure-JAX reference mirroring the PyTorch forward (f32 throughout).
    ep = u_dropped[:, None, :] * v[None, :, :]                        # (B, I, D)
    w_view = params["weight_view"]                                    # (D, 1)
    w_cart = params["weight_view_to_cart"] @ w_view + params["bias_view_to_cart"]
    w_buy = (params["weight_view_to_buy"] @ w_view + params["bias_view_to_buy"]
             + params["weight_cart_to_buy"] @ w_cart + params["bias_cart_to_buy"])
    lv = jnp.squeeze(jnp.tensordot(ep, w_view, axes=([2], [0])))
    lc = jnp.squeeze(jnp.tensordot(ep, w_cart, axes=([2], [0])))
    lb = jnp.squeeze(jnp.tensordot(ep, w_buy, axes=([2], [0])))
    return lv, lc, lb


def init_params(key, num_users, num_items, dim_embedding):
    ks = jax.random.split(key, 9)
    D = dim_embedding
    stdv = 3.0 / math.sqrt(D)
    a = math.sqrt(1.0 / D)
    return {
        "embedding_user": 0.01 * jax.random.normal(ks[0], (num_users, D), jnp.float32),
        "embedding_item": 0.01 * jax.random.normal(ks[1], (num_items, D), jnp.float32),
        "weight_view": jax.random.uniform(ks[2], (D, 1), jnp.float32, -a, a),
        "weight_view_to_cart": jax.random.uniform(ks[3], (D, D), jnp.float32, -stdv, stdv),
        "weight_view_to_buy": jax.random.uniform(ks[4], (D, D), jnp.float32, -stdv, stdv),
        "weight_cart_to_buy": jax.random.uniform(ks[5], (D, D), jnp.float32, -stdv, stdv),
        "bias_view_to_cart": jax.random.uniform(ks[6], (D, 1), jnp.float32, -stdv, stdv),
        "bias_view_to_buy": jax.random.uniform(ks[7], (D, 1), jnp.float32, -stdv, stdv),
        "bias_cart_to_buy": jax.random.uniform(ks[8], (D, 1), jnp.float32, -stdv, stdv),
    }


if __name__ == "__main__":
    key = jax.random.PRNGKey(0)
    k_param, k_users, k_drop = jax.random.split(key, 3)

    num_users, num_items, D = 32, 50, 32
    B = 8
    dropout_ratio = 0.5

    params = init_params(k_param, num_users, num_items, D)
    batch_users = jax.random.randint(k_users, (B,), 0, num_users)
    whole_items = jnp.arange(num_items, dtype=jnp.int32)

    # f32 compute path: tight correctness check against the pure-JAX reference.
    lv, lc, lb, u_d, v = ehcf_forward(
        params, batch_users, whole_items, dropout_ratio, k_drop,
        compute_dtype=jnp.float32, items_are_all=True)
    jax.block_until_ready((lv, lc, lb))

    lv_ref, lc_ref, lb_ref = _reference_forward(params, u_d, v)
    assert lv.shape == (B, num_items) and lc.shape == (B, num_items) and lb.shape == (B, num_items)
    assert jnp.allclose(lv, lv_ref, atol=1e-5, rtol=1e-5)
    assert jnp.allclose(lc, lc_ref, atol=1e-5, rtol=1e-5)
    assert jnp.allclose(lb, lb_ref, atol=1e-5, rtol=1e-5)

    # bf16 streaming path (default, halves HBM traffic): loose check (bf16 inputs,
    # f32 MXU accumulation).
    lv16, lc16, lb16, _, _ = ehcf_forward(
        params, batch_users, whole_items, dropout_ratio, k_drop,
        compute_dtype=jnp.bfloat16, items_are_all=True)
    jax.block_until_ready((lv16, lc16, lb16))
    assert jnp.allclose(lv16, lv_ref, atol=1e-4, rtol=3e-2)
    assert jnp.allclose(lc16, lc_ref, atol=1e-4, rtol=3e-2)
    assert jnp.allclose(lb16, lb_ref, atol=1e-4, rtol=3e-2)

    print("KERNEL_OK")
</pallas_src>

<mosaic_0001>
module attributes {stable_mosaic.version = 11 : i64} {
  func.func @_ehcf_kernel(%arg0: i32, %arg1: memref<24x32xf32, #tpu.memory_space<vmem>>, %arg2: memref<32x128xf32, #tpu.memory_space<vmem>>, %arg3: memref<24x128xf32, #tpu.memory_space<vmem>>) attributes {dimension_semantics = [#tpu.dimension_semantics<parallel>], iteration_bounds = array<i64: 1>, scalar_prefetch = 0 : i64, scratch_operands = 0 : i64, tpu.core_type = #tpu.core_type<tc>, window_params = [{pipeline_mode = #tpu.pipeline_mode<synchronous>, transform_indices = @transform_0, window_bounds = array<i64: 24, 32>}, {transform_indices = @transform_1, window_bounds = array<i64: 32, 128>}, {transform_indices = @transform_2, window_bounds = array<i64: 24, 128>}]} {
    %c0 = arith.constant 0 : index
    %c0_0 = arith.constant 0 : index
    %0 = vector.load %arg1[%c0, %c0_0] : memref<24x32xf32, #tpu.memory_space<vmem>>, vector<24x32xf32>
    %c0_1 = arith.constant 0 : index
    %c0_2 = arith.constant 0 : index
    %1 = vector.load %arg2[%c0_1, %c0_2] : memref<32x128xf32, #tpu.memory_space<vmem>>, vector<32x128xf32>
    %cst = arith.constant dense<0.000000e+00> : vector<24x128xf32>
    %2 = tpu.matmul %0, %1, %cst {dimension_numbers = #tpu.dot_dimension_numbers<[1], [0], [0], [1], [0, 0, 1, 1], [], []>} : vector<24x32xf32>, vector<32x128xf32>, vector<24x128xf32> -> vector<24x128xf32>
    %c0_3 = arith.constant 0 : index
    %c0_4 = arith.constant 0 : index
    %3 = vector.load %arg3[%c0_3, %c0_4] : memref<24x128xf32, #tpu.memory_space<vmem>>, vector<24x128xf32>
    tpu.vector_store %arg3[%c0_3, %c0_4], %2 {strides = array<i32>} : memref<24x128xf32, #tpu.memory_space<vmem>>, vector<24x128xf32>,
    return
  }
  func.func @transform_0(%arg0: i32) -> (i32, i32) {
    %c0_i32 = arith.constant 0 : i32
    %c0_i32_0 = arith.constant 0 : i32
    %c0_i32_1 = arith.constant 0 : i32
    return %c0_i32, %c0_i32_0 : i32, i32
  }
  func.func @transform_1(%arg0: i32) -> (i32, i32) {
    %c0_i32 = arith.constant 0 : i32
    %c0_i32_0 = arith.constant 0 : i32
    return %c0_i32, %arg0 : i32, i32
  }
  func.func @transform_2(%arg0: i32) -> (i32, i32) {
    %c0_i32 = arith.constant 0 : i32
    %c0_i32_0 = arith.constant 0 : i32
    return %c0_i32, %arg0 : i32, i32
  }
}

</mosaic_0001>

<llo_original>
// kernel: tpu_custom_call.1
$region0: #{tpu_custom_call.1}
  #allocation0 [shape = 'u32[]', space=smem, size = 0x4, offset = 0x4, fixed_abs, tag = 'smem constant byte address 0x4 - core index']
  #allocation1 [shape = 'u32[72,128]{1,0:T(1,128)}', space=vmem, size = 0x9000, scoped, tag = 'internal scratch']
  %s0 = inlined_call_operand.hbm [shape: f32[24,32], index: 0, kind: input, shape index: {}]
  %s1 = inlined_call_operand.hbm [shape: f32[32,128], index: 1, kind: input, shape index: {}]
  %s2 = inlined_call_operand.hbm [shape: f32[24,128], index: 2, kind: output, shape index: {}]
  %s3 = sld [smem:[#allocation0]]
  $region26: #{tpu_custom_call.1} parent=0
    _
  %s5 = ssub.s32 1, %s3
  %s6 = scalar_select 0, %s5, %s3
  $region1: #{tpu_custom_call.1} parent=0
    #allocation2 [shape = 'u8[12288]{0}', space=vmem, size = 0x3000, scoped, tag = 'input window, operand 0, single buffered']
    #allocation3 [shape = 's32[1]{0}', space=sflag, size = 0x4, scoped, tag = 'scoped memory for tpu_custom_call.1']
    #allocation4 [shape = 's32[1]{0}', space=sflag, size = 0x4, scoped, tag = 'scoped memory for tpu_custom_call.1']
    #allocation5 [shape = 'u8[16384]{0}', space=vmem, size = 0x4000, scoped, tag = 'input window, operand 1, single buffered']
    #allocation6 [shape = 's32[1]{0}', space=sflag, size = 0x4, scoped, tag = 'scoped memory for tpu_custom_call.1']
    #allocation7 [shape = 'u8[12288]{0}', space=vmem, size = 0x3000, scoped, tag = 'output window, operand 0, single buffered']
    %7 = vsyncpa [#allocation3], 0
    %8 = vsyncpa [#allocation6], 0
    %9 = vsyncpa [#allocation4], 0
    // Predicated region
    $region2: #{tpu_custom_call.1} parent=1 // pred_check
      _
    $region3: #{tpu_custom_call.1} parent=1 // pred_check_branch
      %11 = sbr.rel (0) target = $region5
    $region4: #{tpu_custom_call.1} parent=1 // pred_region
      %13 = vsyncadd [#allocation3], 0
      %s14 = sshll.u32 %s0, 4
      %s15 = int_to_ptr.hbm [resolvable:$true] %s14
      %s16 = sshll.u32 [#allocation2], 4
      %s17 = int_to_ptr.vmem [resolvable:$true] %s16
      %22 = dma.hbm_to_vmem [thread:$0]  %s15, 384, %s17, [#allocation3], 128, 128, 8
    $region5: #{tpu_custom_call.1} parent=1 // pred_fallthru
      _
    // Predicated region
    $region6: #{tpu_custom_call.1} parent=1 // pred_check
      _
    $region7: #{tpu_custom_call.1} parent=1 // pred_check_branch
      %24 = sbr.rel (0) target = $region9
    $region8: #{tpu_custom_call.1} parent=1 // pred_region
      %26 = vsyncadd [#allocation6], 0
      %s27 = sshll.u32 %s1, 4
      %s28 = int_to_ptr.hbm [resolvable:$true] %s27
      %s29 = sshll.u32 [#allocation5], 4
      %s30 = int_to_ptr.vmem [resolvable:$true] %s29
      %35 = dma.hbm_to_vmem [thread:$0]  %s28, 512, %s30, [#allocation6], 128, 128, 8
    $region9: #{tpu_custom_call.1} parent=1 // pred_fallthru
      _
    // Predicated region
    $region10: #{tpu_custom_call.1} parent=1 // pred_check
      _
    $region11: #{tpu_custom_call.1} parent=1 // pred_check_branch
      %37 = sbr.rel (0) target = $region13
    $region12: #{tpu_custom_call.1} parent=1 // pred_region
      %39 = dma.done [#allocation3], 384
    $region13: #{tpu_custom_call.1} parent=1 // pred_fallthru
      _
    // Predicated region
    $region14: #{tpu_custom_call.1} parent=1 // pred_check
      _
    $region15: #{tpu_custom_call.1} parent=1 // pred_check_branch
      %41 = sbr.rel (0) target = $region17
    $region16: #{tpu_custom_call.1} parent=1 // pred_region
      %43 = dma.done [#allocation6], 512
    $region17: #{tpu_custom_call.1} parent=1 // pred_fallthru
      _
    %v44 = vld [vmem:[#allocation2] sm:$0xff]
    %v45 = vld [vmem:[#allocation2 + $0x8] sm:$0xff]
    %v46 = vld [vmem:[#allocation2 + $0x10] sm:$0xff]
    %v47 = vld [vmem:[#allocation5] sm:$0xff]
    %v48 = vld [vmem:[#allocation5 + $0x8] sm:$0xff]
    %v49 = vld [vmem:[#allocation5 + $0x10] sm:$0xff]
    %v50 = vld [vmem:[#allocation5 + $0x18] sm:$0xff]
    %vm51 = vcmask 261120
    %v53 = vsel %vm51, %v44, 0
    %v56 = vsel %vm51, %v45, 0
    %v59 = vsel %vm51, %v46, 0
    %61 = vmatpush.msra.mxu0 0.0
    %62 = vmatpush.msra.mxu0 0.0
    %63 = vmatpush.msra.mxu0 0.0
    %64 = vmatpush.msra.mxu0 0.0
    %65 = vmatpush.msra.mxu0 0.0
    %66 = vmatpush.msra.mxu0 0.0
    %67 = vmatpush.msra.mxu0 0.0
    %68 = vmatpush.msra.mxu0 0.0
    %69 = vmatpush.msra.mxu0 0.0
    %70 = vmatpush.msra.mxu0 0.0
    %71 = vmatpush.msra.mxu0 0.0
    %72 = vmatpush.msra.mxu0 0.0
    %73 = vmatpush.msra.mxu0 %v50
    %74 = vmatpush.msra.mxu0 %v49
    %75 = vmatpush.msra.mxu0 %v48
    %76 = vmatpush.msra.mxu0 %v47
    %77 = vmatmul.f32.gmra.mxu0 %v53
    %v78 = vpop.f32.mrf.mxu0
    %v79 = vadd.f32 0.0, %v78
    %80 = vmatmul.f32.gmra.mxu0 %v56
    %v81 = vpop.f32.mrf.mxu0
    %v82 = vadd.f32 0.0, %v81
    %83 = vmatmul.f32.gmra.mxu0 %v59
    %v84 = vpop.f32.mrf.mxu0
    %v85 = vadd.f32 0.0, %v84
    %86 = vdwg.mxu0
    %87 = vst [vmem:[#allocation7] sm:$0xff] %v79
    %88 = vst [vmem:[#allocation7 + $0x8] sm:$0xff] %v82
    %89 = vst [vmem:[#allocation7 + $0x10] sm:$0xff] %v85
    // Predicated region
    $region18: #{tpu_custom_call.1} parent=1 // pred_check
      _
    $region19: #{tpu_custom_call.1} parent=1 // pred_check_branch
      %91 = sbr.rel (0) target = $region21
    $region20: #{tpu_custom_call.1} parent=1 // pred_region
      %93 = vsyncadd [#allocation4], 0
      %s94 = sshll.u32 [#allocation7], 4
      %s95 = int_to_ptr.vmem [resolvable:$true] %s94
      %s96 = sshll.u32 %s2, 4
      %s97 = int_to_ptr.hbm [resolvable:$true] %s96
      %102 = dma.vmem_to_hbm [thread:$0]  %s95, 384, %s97, [#allocation4], 128, 128, 8
    $region21: #{tpu_custom_call.1} parent=1 // pred_fallthru
      _
    // Predicated region
    $region22: #{tpu_custom_call.1} parent=1 // pred_check
      _
    $region23: #{tpu_custom_call.1} parent=1 // pred_check_branch
      %104 = sbr.rel (0) target = $region25
    $region24: #{tpu_custom_call.1} parent=1 // pred_region
      %106 = dma.done [#allocation4], 384
    $region25: #{tpu_custom_call.1} parent=1 // pred_fallthru
      _
    %107 = vsyncpa [#allocation3], 1
    %108 = vsyncpa [#allocation6], 1
    %109 = vsyncpa [#allocation4], 1

</llo_original>
